<compile_context>
chip_gen: v6e
topology: v6e:2x2x1
jax: 0.10.0
libtpu: 0.0.40
codegen_flags: <defaults>
</compile_context>

<pallas_src>
import math

import jax
import jax.numpy as jnp
from jax.experimental import pallas as pl
from jax.experimental.pallas import tpu as pltpu

RESNET_OUTPUT_SIZE = 2048   # module's `size == 256` branch
HIDDEN = 100
OUT = 5

HIDDEN_PAD = 128            # pad 100 -> 128 lanes (MXU / vreg alignment)
OUT_PAD = 128               # fc2 weight kept lane-padded for the MXU
TB = 1024                   # max batch tile (rows)


def _round_up(x, m):
    return (x + m - 1) // m * m


def _mlp_kernel(x_ref, w1_ref, b1_ref, w2_ref, b2_ref, o_ref):
    # In-kernel cast of x to the compute dtype (bf16): a VPU pass fully hidden
    # under the x HBM->VMEM DMA (no extra HBM traffic in the wrapper).
    xb = x_ref[...].astype(w1_ref.dtype)
    # fc1 (+bias, ReLU): bf16 x / bf16 w1 on the MXU, f32 accumulation.
    h = jnp.dot(xb, w1_ref[...], preferred_element_type=jnp.float32)
    h = jnp.maximum(h + b1_ref[...], 0.0)
    # fc2 (+bias) in f32, fused in the same kernel (no HBM round-trip of h).
    o = jnp.dot(h, w2_ref[...], preferred_element_type=jnp.float32) + b2_ref[...]
    # Store only the 5 valid output lanes (unpadded output array).
    o_ref[...] = o[:, :OUT].astype(o_ref.dtype)


def resnet_class1_forward(x, params):
    """x: anything reshapable to (-1, 2048). params: from prepare_params().
    Returns (N, 5) float32."""
    w1, b1, w2, b2 = params["w1"], params["b1"], params["w2"], params["b2"]

    # x.view(-1, resnet_output_size); keep x in its HBM dtype (cast in-kernel).
    x2d = jnp.reshape(x, (-1, RESNET_OUTPUT_SIZE))
    n = x2d.shape[0]

    # Batch tile:
    #   * n <= 8       : one full-array block (block dim == array dim is legal).
    #   * otherwise    : split so the grid has >= 2 steps (v7x megacore can
    #                    shard the "parallel" axis), capped at TB rows.
    if n <= 8:
        tb = n
    else:
        tb = min(TB, _round_up(pl.cdiv(n, 2), 8))
    steps = pl.cdiv(n, tb)   # ragged last tile is masked by Pallas

    flops = 2 * n * RESNET_OUTPUT_SIZE * HIDDEN_PAD + 2 * n * HIDDEN_PAD * OUT_PAD
    bytes_accessed = (
        n * RESNET_OUTPUT_SIZE * x2d.dtype.itemsize           # stream x (true dtype)
        + RESNET_OUTPUT_SIZE * HIDDEN_PAD * w1.dtype.itemsize  # w1 (VMEM-resident)
        + HIDDEN_PAD * OUT_PAD * 4                             # w2
        + (HIDDEN_PAD + OUT_PAD) * 4                           # biases
        + n * OUT * 4)                                         # unpadded output

    out = pl.pallas_call(
        _mlp_kernel,
        out_shape=jax.ShapeDtypeStruct((n, OUT), jnp.float32),
        grid=(steps,),
        in_specs=[
            pl.BlockSpec((tb, RESNET_OUTPUT_SIZE), lambda i: (i, 0)),          # x: streamed
            pl.BlockSpec((RESNET_OUTPUT_SIZE, HIDDEN_PAD), lambda i: (0, 0)),  # w1: resident
            pl.BlockSpec((1, HIDDEN_PAD), lambda i: (0, 0)),                   # b1: resident
            pl.BlockSpec((HIDDEN_PAD, OUT_PAD), lambda i: (0, 0)),             # w2: resident
            pl.BlockSpec((1, OUT_PAD), lambda i: (0, 0)),                      # b2: resident
        ],
        out_specs=pl.BlockSpec((tb, OUT), lambda i: (i, 0)),   # unpadded (last dim == full)
        compiler_params=pltpu.CompilerParams(
            dimension_semantics=("parallel",),        # v7x megacore; no-op on v5e/v6e
            vmem_limit_bytes=32 * 1024 * 1024),       # fits f32 x double-buffer on v5e too
        cost_estimate=pl.CostEstimate(
            flops=flops, transcendentals=0, bytes_accessed=bytes_accessed),
    )(x2d, w1, b1, w2, b2)

    # .squeeze(1) of the PyTorch code is a no-op on (N, 5).
    return out


def init_params(key):
    """nn.Linear default init: U(-1/sqrt(fan_in), 1/sqrt(fan_in)), unpadded f32."""
    k1, k2, k3, k4 = jax.random.split(key, 4)
    bound1 = 1.0 / math.sqrt(RESNET_OUTPUT_SIZE)
    bound2 = 1.0 / math.sqrt(HIDDEN)
    return {
        "w1": jax.random.uniform(k1, (RESNET_OUTPUT_SIZE, HIDDEN), jnp.float32,
                                 -bound1, bound1),
        "b1": jax.random.uniform(k2, (HIDDEN,), jnp.float32, -bound1, bound1),
        "b2": jax.random.uniform(k4, (OUT,), jnp.float32, -bound2, bound2),
        "w2": jax.random.uniform(k3, (HIDDEN, OUT), jnp.float32, -bound2, bound2),
    }


def prepare_params(raw, compute_dtype=jnp.bfloat16):
    """Pad feature dims to 128 lanes and cast fc1 weight to the compute dtype.
    Done ONCE at init time (hoisted off the per-call path)."""
    w1 = jnp.zeros((RESNET_OUTPUT_SIZE, HIDDEN_PAD), jnp.float32).at[:, :HIDDEN].set(raw["w1"])
    b1 = jnp.zeros((1, HIDDEN_PAD), jnp.float32).at[0, :HIDDEN].set(raw["b1"])
    w2 = jnp.zeros((HIDDEN_PAD, OUT_PAD), jnp.float32).at[:HIDDEN, :OUT].set(raw["w2"])
    b2 = jnp.zeros((1, OUT_PAD), jnp.float32).at[0, :OUT].set(raw["b2"])
    return {"w1": w1.astype(compute_dtype), "b1": b1, "w2": w2, "b2": b2}


def _reference_quantized(x, raw):
    """Same bf16 quantization of x / fc1 weight as the kernel, math in f32."""
    xq = jnp.reshape(x, (-1, RESNET_OUTPUT_SIZE)).astype(jnp.bfloat16).astype(jnp.float32)
    w1q = raw["w1"].astype(jnp.bfloat16).astype(jnp.float32)
    return jnp.maximum(xq @ w1q + raw["b1"], 0.0) @ raw["w2"] + raw["b2"]


if __name__ == "__main__":
    key = jax.random.PRNGKey(0)
    kx, kx2, kp = jax.random.split(key, 3)

    raw = init_params(kp)
    params = prepare_params(raw, compute_dtype=jnp.bfloat16)
    fwd = jax.jit(resnet_class1_forward)

    # --- Test 1: small batch (n=2, single full-array block) -----------------
    x = jax.random.normal(kx, (2, RESNET_OUTPUT_SIZE), jnp.float32)
    out = jax.block_until_ready(fwd(x, params))
    assert out.shape == (2, OUT)
    ref_q = _reference_quantized(x, raw)
    assert jnp.allclose(out, ref_q, atol=1e-2, rtol=1e-2), \
        float(jnp.max(jnp.abs(out - ref_q)))
    ref_f32 = jnp.maximum(x @ raw["w1"] + raw["b1"], 0.0) @ raw["w2"] + raw["b2"]
    assert jnp.allclose(out, ref_f32, atol=5e-2, rtol=5e-2), \
        float(jnp.max(jnp.abs(out - ref_f32)))

    # --- Test 2: ragged batch (n=10 -> tb=8, 2 grid steps, masked last tile) -
    x2 = jax.random.normal(kx2, (10, RESNET_OUTPUT_SIZE), jnp.float32)
    out2 = jax.block_until_ready(fwd(x2, params))
    assert out2.shape == (10, OUT)
    ref2 = _reference_quantized(x2, raw)
    assert jnp.allclose(out2, ref2, atol=1e-2, rtol=1e-2), \
        float(jnp.max(jnp.abs(out2 - ref2)))

    print("KERNEL_OK")
</pallas_src>

<mosaic_0001>
module attributes {stable_mosaic.version = 11 : i64} {
  func.func @_mlp_kernel(%arg0: i32, %arg1: memref<2x2048xf32, #tpu.memory_space<vmem>>, %arg2: memref<2048x128xbf16, #tpu.memory_space<vmem>>, %arg3: memref<1x128xf32, #tpu.memory_space<vmem>>, %arg4: memref<128x128xf32, #tpu.memory_space<vmem>>, %arg5: memref<1x128xf32, #tpu.memory_space<vmem>>, %arg6: memref<2x5xf32, #tpu.memory_space<vmem>>) attributes {dimension_semantics = [#tpu.dimension_semantics<parallel>], iteration_bounds = array<i64: 1>, scalar_prefetch = 0 : i64, scratch_operands = 0 : i64, tpu.core_type = #tpu.core_type<tc>, window_params = [{transform_indices = @transform_0, window_bounds = array<i64: 2, 2048>}, {pipeline_mode = #tpu.pipeline_mode<synchronous>, transform_indices = @transform_1, window_bounds = array<i64: 2048, 128>}, {pipeline_mode = #tpu.pipeline_mode<synchronous>, transform_indices = @transform_2, window_bounds = array<i64: 1, 128>}, {pipeline_mode = #tpu.pipeline_mode<synchronous>, transform_indices = @transform_3, window_bounds = array<i64: 128, 128>}, {pipeline_mode = #tpu.pipeline_mode<synchronous>, transform_indices = @transform_4, window_bounds = array<i64: 1, 128>}, {transform_indices = @transform_5, window_bounds = array<i64: 2, 5>}]} {
    %c0 = arith.constant 0 : index
    %c0_0 = arith.constant 0 : index
    %0 = vector.load %arg1[%c0, %c0_0] : memref<2x2048xf32, #tpu.memory_space<vmem>>, vector<2x2048xf32>
    %1 = arith.truncf %0 : vector<2x2048xf32> to vector<2x2048xbf16>
    %c0_1 = arith.constant 0 : index
    %c0_2 = arith.constant 0 : index
    %2 = vector.load %arg2[%c0_1, %c0_2] : memref<2048x128xbf16, #tpu.memory_space<vmem>>, vector<2048x128xbf16>
    %cst = arith.constant dense<0.000000e+00> : vector<2x128xf32>
    %3 = tpu.matmul %1, %2, %cst {dimension_numbers = #tpu.dot_dimension_numbers<[1], [0], [0], [1], [0, 0, 1, 1], [], []>} : vector<2x2048xbf16>, vector<2048x128xbf16>, vector<2x128xf32> -> vector<2x128xf32>
    %c0_3 = arith.constant 0 : index
    %c0_4 = arith.constant 0 : index
    %4 = vector.load %arg3[%c0_3, %c0_4] : memref<1x128xf32, #tpu.memory_space<vmem>>, vector<1x128xf32>
    %5 = vector.broadcast %4 : vector<1x128xf32> to vector<2x128xf32>
    %6 = arith.addf %3, %5 : vector<2x128xf32>
    %cst_5 = arith.constant 0.000000e+00 : f32
    %7 = vector.broadcast %cst_5 : f32 to vector<2x128xf32>
    %8 = arith.maximumf %6, %7 : vector<2x128xf32>
    %c0_6 = arith.constant 0 : index
    %c0_7 = arith.constant 0 : index
    %9 = vector.load %arg4[%c0_6, %c0_7] : memref<128x128xf32, #tpu.memory_space<vmem>>, vector<128x128xf32>
    %cst_8 = arith.constant dense<0.000000e+00> : vector<2x128xf32>
    %10 = tpu.matmul %8, %9, %cst_8 {dimension_numbers = #tpu.dot_dimension_numbers<[1], [0], [0], [1], [0, 0, 1, 1], [], []>} : vector<2x128xf32>, vector<128x128xf32>, vector<2x128xf32> -> vector<2x128xf32>
    %c0_9 = arith.constant 0 : index
    %c0_10 = arith.constant 0 : index
    %11 = vector.load %arg5[%c0_9, %c0_10] : memref<1x128xf32, #tpu.memory_space<vmem>>, vector<1x128xf32>
    %12 = vector.broadcast %11 : vector<1x128xf32> to vector<2x128xf32>
    %13 = arith.addf %10, %12 : vector<2x128xf32>
    %14 = vector.extract_strided_slice %13 {offsets = [0, 0], sizes = [2, 5], strides = [1, 1]} : vector<2x128xf32> to vector<2x5xf32>
    %c0_11 = arith.constant 0 : index
    %c0_12 = arith.constant 0 : index
    %15 = vector.load %arg6[%c0_11, %c0_12] : memref<2x5xf32, #tpu.memory_space<vmem>>, vector<2x5xf32>
    tpu.vector_store %arg6[%c0_11, %c0_12], %14 {strides = array<i32>} : memref<2x5xf32, #tpu.memory_space<vmem>>, vector<2x5xf32>,
    return
  }
  func.func @transform_0(%arg0: i32) -> (i32, i32) {
    %c0_i32 = arith.constant 0 : i32
    %c0_i32_0 = arith.constant 0 : i32
    return %arg0, %c0_i32 : i32, i32
  }
  func.func @transform_1(%arg0: i32) -> (i32, i32) {
    %c0_i32 = arith.constant 0 : i32
    %c0_i32_0 = arith.constant 0 : i32
    %c0_i32_1 = arith.constant 0 : i32
    return %c0_i32, %c0_i32_0 : i32, i32
  }
  func.func @transform_2(%arg0: i32) -> (i32, i32) {
    %c0_i32 = arith.constant 0 : i32
    %c0_i32_0 = arith.constant 0 : i32
    %c0_i32_1 = arith.constant 0 : i32
    return %c0_i32, %c0_i32_0 : i32, i32
  }
  func.func @transform_3(%arg0: i32) -> (i32, i32) {
    %c0_i32 = arith.constant 0 : i32
    %c0_i32_0 = arith.constant 0 : i32
    %c0_i32_1 = arith.constant 0 : i32
    return %c0_i32, %c0_i32_0 : i32, i32
  }
  func.func @transform_4(%arg0: i32) -> (i32, i32) {
    %c0_i32 = arith.constant 0 : i32
    %c0_i32_0 = arith.constant 0 : i32
    %c0_i32_1 = arith.constant 0 : i32
    return %c0_i32, %c0_i32_0 : i32, i32
  }
  func.func @transform_5(%arg0: i32) -> (i32, i32) {
    %c0_i32 = arith.constant 0 : i32
    %c0_i32_0 = arith.constant 0 : i32
    return %arg0, %c0_i32 : i32, i32
  }
}

</mosaic_0001>

<llo_original>
// kernel: resnet_class1_forward.1
$region0: #{resnet_class1_forward.1}
  #allocation0 [shape = 'u32[]', space=smem, size = 0x4, offset = 0x4, fixed_abs, tag = 'smem constant byte address 0x4 - core index']
  #allocation1 [shape = 'u32[144,128]{1,0:T(1,128)}', space=vmem, size = 0x12000, scoped, tag = 'internal scratch']
  %s0 = inlined_call_operand.hbm [shape: f32[2,2048], index: 0, kind: input, shape index: {}]
  %s1 = inlined_call_operand.hbm [shape: bf16[2048,128], index: 1, kind: input, shape index: {}]
  %s2 = inlined_call_operand.vmem [shape: f32[1,128], index: 2, kind: input, shape index: {}]
  %s3 = inlined_call_operand.hbm [shape: f32[128,128], index: 3, kind: input, shape index: {}]
  %s4 = inlined_call_operand.vmem [shape: f32[1,128], index: 4, kind: input, shape index: {}]
  %s5 = inlined_call_operand.hbm [shape: f32[2,5], index: 5, kind: output, shape index: {}]
  %s6 = sld [smem:[#allocation0]]
  $region42: #{resnet_class1_forward.1} parent=0
    _
  %s8 = ssub.s32 1, %s6
  %s9 = scalar_select 0, %s8, %s6
  $region1: #{resnet_class1_forward.1} parent=0
    #allocation2 [shape = 'u8[16384]{0}', space=vmem, size = 0x4000, scoped, tag = 'input window, operand 0, single buffered']
    #allocation3 [shape = 's32[1]{0}', space=sflag, size = 0x4, scoped, tag = 'scoped memory for resnet_class1_forward.1']
    #allocation4 [shape = 's32[1]{0}', space=sflag, size = 0x4, scoped, tag = 'scoped memory for resnet_class1_forward.1']
    #allocation5 [shape = 'u8[524288]{0}', space=vmem, size = 0x80000, scoped, tag = 'input window, operand 1, single buffered']
    #allocation6 [shape = 's32[1]{0}', space=sflag, size = 0x4, scoped, tag = 'scoped memory for resnet_class1_forward.1']
    #allocation7 [shape = 'u8[65536]{0}', space=vmem, size = 0x10000, scoped, tag = 'input window, operand 3, single buffered']
    #allocation8 [shape = 'u8[1024]{0}', space=vmem, size = 0x400, scoped, tag = 'output window, operand 0, single buffered']
    %10 = vsyncpa [#allocation3], 0
    %11 = vsyncpa [#allocation6], 0
    %12 = vsyncpa [#allocation4], 0
    // Predicated region
    $region2: #{resnet_class1_forward.1} parent=1 // pred_check
      _
    $region3: #{resnet_class1_forward.1} parent=1 // pred_check_branch
      %14 = sbr.rel (0) target = $region5
    $region4: #{resnet_class1_forward.1} parent=1 // pred_region
      %s16 = ssub.s32 512, 512
      %17 = vsyncadd [#allocation3], %s16
      %s19 = sshll.u32 [#allocation2], 4
      %s20 = int_to_ptr.vmem [resolvable:$true] %s19
      %22 = dma.hbm_to_vmem [thread:$0]  %s0, 512, %s20, [#allocation3]
    $region5: #{resnet_class1_forward.1} parent=1 // pred_fallthru
      _
    // Predicated region
    $region6: #{resnet_class1_forward.1} parent=1 // pred_check
      _
    $region7: #{resnet_class1_forward.1} parent=1 // pred_check_branch
      %24 = sbr.rel (0) target = $region9
    $region8: #{resnet_class1_forward.1} parent=1 // pred_region
      %s26 = ssub.s32 16384, 16384
      %27 = vsyncadd [#allocation6], %s26
      %s28 = sshll.u32 [#allocation5], 4
      %s29 = int_to_ptr.vmem [resolvable:$true] %s28
      %34 = dma.hbm_to_vmem [thread:$0]  %s1, 16384, %s29, [#allocation6], 64, 64, 4
    $region9: #{resnet_class1_forward.1} parent=1 // pred_fallthru
      _
    // Predicated region
    $region10: #{resnet_class1_forward.1} parent=1 // pred_check
      _
    $region11: #{resnet_class1_forward.1} parent=1 // pred_check_branch
      %36 = sbr.rel (0) target = $region13
    $region12: #{resnet_class1_forward.1} parent=1 // pred_region
      _
    $region13: #{resnet_class1_forward.1} parent=1 // pred_fallthru
      _
    // Predicated region
    $region14: #{resnet_class1_forward.1} parent=1 // pred_check
      _
    $region15: #{resnet_class1_forward.1} parent=1 // pred_check_branch
      %38 = sbr.rel (0) target = $region17
    $region16: #{resnet_class1_forward.1} parent=1 // pred_region
      %s40 = ssub.s32 2048, 2048
      %41 = vsyncadd [#allocation6], %s40
      %s42 = sshll.u32 [#allocation7], 4
      %s43 = int_to_ptr.vmem [resolvable:$true] %s42
      %48 = dma.hbm_to_vmem [thread:$0]  %s3, 2048, %s43, [#allocation6], 128, 128, 8
    $region17: #{resnet_class1_forward.1} parent=1 // pred_fallthru
      _
    // Predicated region
    $region18: #{resnet_class1_forward.1} parent=1 // pred_check
      _
    $region19: #{resnet_class1_forward.1} parent=1 // pred_check_branch
      %50 = sbr.rel (0) target = $region21
    $region20: #{resnet_class1_forward.1} parent=1 // pred_region
      _
    $region21: #{resnet_class1_forward.1} parent=1 // pred_fallthru
      _
    // Predicated region
    $region22: #{resnet_class1_forward.1} parent=1 // pred_check
      _
    $region23: #{resnet_class1_forward.1} parent=1 // pred_check_branch
      %52 = sbr.rel (0) target = $region25
    $region24: #{resnet_class1_forward.1} parent=1 // pred_region
      %53 = dma.done [#allocation3], 512
    $region25: #{resnet_class1_forward.1} parent=1 // pred_fallthru
      _
    // Predicated region
    $region26: #{resnet_class1_forward.1} parent=1 // pred_check
      _
    $region27: #{resnet_class1_forward.1} parent=1 // pred_check_branch
      %55 = sbr.rel (0) target = $region29
    $region28: #{resnet_class1_forward.1} parent=1 // pred_region
      %56 = dma.done [#allocation6], 16384
    $region29: #{resnet_class1_forward.1} parent=1 // pred_fallthru
      _
    // Predicated region
    $region30: #{resnet_class1_forward.1} parent=1 // pred_check
      _
    $region31: #{resnet_class1_forward.1} parent=1 // pred_check_branch
      %58 = sbr.rel (0) target = $region33
    $region32: #{resnet_class1_forward.1} parent=1 // pred_region
      %59 = dma.done [#allocation6], 2048
    $region33: #{resnet_class1_forward.1} parent=1 // pred_fallthru
      _
    %v61 = vld [vmem:[#allocation2] sm:$0xff]
    %v62 = vld [vmem:[#allocation2 + $0x8] sm:$0xff]
    %v63 = vld [vmem:[#allocation2 + $0x10] sm:$0xff]
    %v64 = vld [vmem:[#allocation2 + $0x18] sm:$0xff]
    %v69 = vcombine.high %v61, %v61
    %v71 = vunpack.c.l.s4 1983009808
    %v72 = vunpack.c.0.s8 %v71
    %v73 = vlaneseq
    %v74 = vshrl.u32 %v73, 7
    %v75 = vsub.s32 %v72, %v74
    %v76 = vrot.slane %v61, %v75
    %v78 = vunpack.c.l.s4 1983009808
    %v79 = vunpack.c.0.s8 %v78
    %v80 = vlaneseq
    %v81 = vshrl.u32 %v80, 7
    %v82 = vsub.s32 %v79, %v81
    %v83 = vrot.slane %v69, %v82
    %v84 = vcombine.high %v76, %v76
    %v85 = vcombine.high %v83, %v83
    %v86 = vcombine.high %v62, %v62
    %v88 = vunpack.c.l.s4 1983009808
    %v89 = vunpack.c.0.s8 %v88
    %v90 = vlaneseq
    %v91 = vshrl.u32 %v90, 7
    %v92 = vsub.s32 %v89, %v91
    %v93 = vrot.slane %v62, %v92
    %v95 = vunpack.c.l.s4 1983009808
    %v96 = vunpack.c.0.s8 %v95
    %v97 = vlaneseq
    %v98 = vshrl.u32 %v97, 7
    %v99 = vsub.s32 %v96, %v98
    %v100 = vrot.slane %v86, %v99
    %v101 = vcombine.high %v93, %v93
    %v102 = vcombine.high %v100, %v100
    %v103 = vcombine.high %v63, %v63
    %v105 = vunpack.c.l.s4 1983009808
    %v106 = vunpack.c.0.s8 %v105
    %v107 = vlaneseq
    %v108 = vshrl.u32 %v107, 7
    %v109 = vsub.s32 %v106, %v108
    %v110 = vrot.slane %v63, %v109
    %v112 = vunpack.c.l.s4 1983009808
    %v113 = vunpack.c.0.s8 %v112
    %v114 = vlaneseq
    %v115 = vshrl.u32 %v114, 7
    %v116 = vsub.s32 %v113, %v115
    %v117 = vrot.slane %v103, %v116
    %v118 = vcombine.high %v110, %v110
    %v119 = vcombine.high %v117, %v117
    %v120 = vcombine.high %v64, %v64
    %v122 = vunpack.c.l.s4 1983009808
    %v123 = vunpack.c.0.s8 %v122
    %v124 = vlaneseq
    %v125 = vshrl.u32 %v124, 7
    %v126 = vsub.s32 %v123, %v125
    %v127 = vrot.slane %v64, %v126
    %v129 = vunpack.c.l.s4 1983009808
    %v130 = vunpack.c.0.s8 %v129
    %v131 = vlaneseq
    %v132 = vshrl.u32 %v131, 7
    %v133 = vsub.s32 %v130, %v132
    %v134 = vrot.slane %v120, %v133
    %v135 = vcombine.high %v127, %v127
    %v136 = vcombine.high %v134, %v134
    %v153 = vpack.c.bf16 %v76, %v76
    %v154 = vpack.c.bf16 %v84, %v84
    %v155 = vpack.c.bf16 %v83, %v83
    %v156 = vpack.c.bf16 %v85, %v85
    %v157 = vpack.c.bf16 %v93, %v93
    %v158 = vpack.c.bf16 %v101, %v101
    %v159 = vpack.c.bf16 %v100, %v100
    %v160 = vpack.c.bf16 %v102, %v102
    %v161 = vpack.c.bf16 %v110, %v110
    %v162 = vpack.c.bf16 %v118, %v118
    %v163 = vpack.c.bf16 %v117, %v117
    %v164 = vpack.c.bf16 %v119, %v119
    %v165 = vpack.c.bf16 %v127, %v127
    %v166 = vpack.c.bf16 %v135, %v135
    %v167 = vpack.c.bf16 %v134, %v134
    %v168 = vpack.c.bf16 %v136, %v136
    %v169 = vld [vmem:[#allocation5] sm:$0xf]
    %v170 = vld [vmem:[#allocation5 + $0x4] sm:$0xf]
    %v171 = vld [vmem:[#allocation5 + $0x8] sm:$0xf]
    %v172 = vld [vmem:[#allocation5 + $0xc] sm:$0xf]
    %v173 = vld [vmem:[#allocation5 + $0x10] sm:$0xf]
    %v174 = vld [vmem:[#allocation5 + $0x14] sm:$0xf]
    %v175 = vld [vmem:[#allocation5 + $0x18] sm:$0xf]
    %v176 = vld [vmem:[#allocation5 + $0x1c] sm:$0xf]
    %v177 = vld [vmem:[#allocation5 + $0x20] sm:$0xf]
    %v178 = vld [vmem:[#allocation5 + $0x24] sm:$0xf]
    %v179 = vld [vmem:[#allocation5 + $0x28] sm:$0xf]
    %v180 = vld [vmem:[#allocation5 + $0x2c] sm:$0xf]
    %v181 = vld [vmem:[#allocation5 + $0x30] sm:$0xf]
    %v182 = vld [vmem:[#allocation5 + $0x34] sm:$0xf]
    %v183 = vld [vmem:[#allocation5 + $0x38] sm:$0xf]
    %v184 = vld [vmem:[#allocation5 + $0x3c] sm:$0xf]
    %v185 = vld [vmem:[#allocation5 + $0x40] sm:$0xf]
    %v186 = vld [vmem:[#allocation5 + $0x44] sm:$0xf]
    %v187 = vld [vmem:[#allocation5 + $0x48] sm:$0xf]
    %v188 = vld [vmem:[#allocation5 + $0x4c] sm:$0xf]
    %v189 = vld [vmem:[#allocation5 + $0x50] sm:$0xf]
    %v190 = vld [vmem:[#allocation5 + $0x54] sm:$0xf]
    %v191 = vld [vmem:[#allocation5 + $0x58] sm:$0xf]
    %v192 = vld [vmem:[#allocation5 + $0x5c] sm:$0xf]
    %v193 = vld [vmem:[#allocation5 + $0x60] sm:$0xf]
    %v194 = vld [vmem:[#allocation5 + $0x64] sm:$0xf]
    %v195 = vld [vmem:[#allocation5 + $0x68] sm:$0xf]
    %v196 = vld [vmem:[#allocation5 + $0x6c] sm:$0xf]
    %v197 = vld [vmem:[#allocation5 + $0x70] sm:$0xf]
    %v198 = vld [vmem:[#allocation5 + $0x74] sm:$0xf]
    %v199 = vld [vmem:[#allocation5 + $0x78] sm:$0xf]
    %v200 = vld [vmem:[#allocation5 + $0x7c] sm:$0xf]
    %v201 = vld [vmem:[#allocation5 + $0x80] sm:$0xf]
    %v202 = vld [vmem:[#allocation5 + $0x84] sm:$0xf]
    %v203 = vld [vmem:[#allocation5 + $0x88] sm:$0xf]
    %v204 = vld [vmem:[#allocation5 + $0x8c] sm:$0xf]
    %v205 = vld [vmem:[#allocation5 + $0x90] sm:$0xf]
    %v206 = vld [vmem:[#allocation5 + $0x94] sm:$0xf]
    %v207 = vld [vmem:[#allocation5 + $0x98] sm:$0xf]
    %v208 = vld [vmem:[#allocation5 + $0x9c] sm:$0xf]
    %v209 = vld [vmem:[#allocation5 + $0xa0] sm:$0xf]
    %v210 = vld [vmem:[#allocation5 + $0xa4] sm:$0xf]
    %v211 = vld [vmem:[#allocation5 + $0xa8] sm:$0xf]
    %v212 = vld [vmem:[#allocation5 + $0xac] sm:$0xf]
    %v213 = vld [vmem:[#allocation5 + $0xb0] sm:$0xf]
    %v214 = vld [vmem:[#allocation5 + $0xb4] sm:$0xf]
    %v215 = vld [vmem:[#allocation5 + $0xb8] sm:$0xf]
    %v216 = vld [vmem:[#allocation5 + $0xbc] sm:$0xf]
    %v217 = vld [vmem:[#allocation5 + $0xc0] sm:$0xf]
    %v218 = vld [vmem:[#allocation5 + $0xc4] sm:$0xf]
    %v219 = vld [vmem:[#allocation5 + $0xc8] sm:$0xf]
    %v220 = vld [vmem:[#allocation5 + $0xcc] sm:$0xf]
    %v221 = vld [vmem:[#allocation5 + $0xd0] sm:$0xf]
    %v222 = vld [vmem:[#allocation5 + $0xd4] sm:$0xf]
    %v223 = vld [vmem:[#allocation5 + $0xd8] sm:$0xf]
    %v224 = vld [vmem:[#allocation5 + $0xdc] sm:$0xf]
    %v225 = vld [vmem:[#allocation5 + $0xe0] sm:$0xf]
    %v226 = vld [vmem:[#allocation5 + $0xe4] sm:$0xf]
    %v227 = vld [vmem:[#allocation5 + $0xe8] sm:$0xf]
    %v228 = vld [vmem:[#allocation5 + $0xec] sm:$0xf]
    %v229 = vld [vmem:[#allocation5 + $0xf0] sm:$0xf]
    %v230 = vld [vmem:[#allocation5 + $0xf4] sm:$0xf]
    %v231 = vld [vmem:[#allocation5 + $0xf8] sm:$0xf]
    %v232 = vld [vmem:[#allocation5 + $0xfc] sm:$0xf]
    %v233 = vld [vmem:[#allocation5 + $0x100] sm:$0xf]
    %v234 = vld [vmem:[#allocation5 + $0x104] sm:$0xf]
    %v235 = vld [vmem:[#allocation5 + $0x108] sm:$0xf]
    %v236 = vld [vmem:[#allocation5 + $0x10c] sm:$0xf]
    %v237 = vld [vmem:[#allocation5 + $0x110] sm:$0xf]
    %v238 = vld [vmem:[#allocation5 + $0x114] sm:$0xf]
    %v239 = vld [vmem:[#allocation5 + $0x118] sm:$0xf]
    %v240 = vld [vmem:[#allocation5 + $0x11c] sm:$0xf]
    %v241 = vld [vmem:[#allocation5 + $0x120] sm:$0xf]
    %v242 = vld [vmem:[#allocation5 + $0x124] sm:$0xf]
    %v243 = vld [vmem:[#allocation5 + $0x128] sm:$0xf]
    %v244 = vld [vmem:[#allocation5 + $0x12c] sm:$0xf]
    %v245 = vld [vmem:[#allocation5 + $0x130] sm:$0xf]
    %v246 = vld [vmem:[#allocation5 + $0x134] sm:$0xf]
    %v247 = vld [vmem:[#allocation5 + $0x138] sm:$0xf]
    %v248 = vld [vmem:[#allocation5 + $0x13c] sm:$0xf]
    %v249 = vld [vmem:[#allocation5 + $0x140] sm:$0xf]
    %v250 = vld [vmem:[#allocation5 + $0x144] sm:$0xf]
    %v251 = vld [vmem:[#allocation5 + $0x148] sm:$0xf]
    %v252 = vld [vmem:[#allocation5 + $0x14c] sm:$0xf]
    %v253 = vld [vmem:[#allocation5 + $0x150] sm:$0xf]
    %v254 = vld [vmem:[#allocation5 + $0x154] sm:$0xf]
    %v255 = vld [vmem:[#allocation5 + $0x158] sm:$0xf]
    %v256 = vld [vmem:[#allocation5 + $0x15c] sm:$0xf]
    %v257 = vld [vmem:[#allocation5 + $0x160] sm:$0xf]
    %v258 = vld [vmem:[#allocation5 + $0x164] sm:$0xf]
    %v259 = vld [vmem:[#allocation5 + $0x168] sm:$0xf]
    %v260 = vld [vmem:[#allocation5 + $0x16c] sm:$0xf]
    %v261 = vld [vmem:[#allocation5 + $0x170] sm:$0xf]
    %v262 = vld [vmem:[#allocation5 + $0x174] sm:$0xf]
    %v263 = vld [vmem:[#allocation5 + $0x178] sm:$0xf]
    %v264 = vld [vmem:[#allocation5 + $0x17c] sm:$0xf]
    %v265 = vld [vmem:[#allocation5 + $0x180] sm:$0xf]
    %v266 = vld [vmem:[#allocation5 + $0x184] sm:$0xf]
    %v267 = vld [vmem:[#allocation5 + $0x188] sm:$0xf]
    %v268 = vld [vmem:[#allocation5 + $0x18c] sm:$0xf]
    %v269 = vld [vmem:[#allocation5 + $0x190] sm:$0xf]
    %v270 = vld [vmem:[#allocation5 + $0x194] sm:$0xf]
    %v271 = vld [vmem:[#allocation5 + $0x198] sm:$0xf]
    %v272 = vld [vmem:[#allocation5 + $0x19c] sm:$0xf]
    %v273 = vld [vmem:[#allocation5 + $0x1a0] sm:$0xf]
    %v274 = vld [vmem:[#allocation5 + $0x1a4] sm:$0xf]
    %v275 = vld [vmem:[#allocation5 + $0x1a8] sm:$0xf]
    %v276 = vld [vmem:[#allocation5 + $0x1ac] sm:$0xf]
    %v277 = vld [vmem:[#allocation5 + $0x1b0] sm:$0xf]
    %v278 = vld [vmem:[#allocation5 + $0x1b4] sm:$0xf]
    %v279 = vld [vmem:[#allocation5 + $0x1b8] sm:$0xf]
    %v280 = vld [vmem:[#allocation5 + $0x1bc] sm:$0xf]
    %v281 = vld [vmem:[#allocation5 + $0x1c0] sm:$0xf]
    %v282 = vld [vmem:[#allocation5 + $0x1c4] sm:$0xf]
    %v283 = vld [vmem:[#allocation5 + $0x1c8] sm:$0xf]
    %v284 = vld [vmem:[#allocation5 + $0x1cc] sm:$0xf]
    %v285 = vld [vmem:[#allocation5 + $0x1d0] sm:$0xf]
    %v286 = vld [vmem:[#allocation5 + $0x1d4] sm:$0xf]
    %v287 = vld [vmem:[#allocation5 + $0x1d8] sm:$0xf]
    %v288 = vld [vmem:[#allocation5 + $0x1dc] sm:$0xf]
    %v289 = vld [vmem:[#allocation5 + $0x1e0] sm:$0xf]
    %v290 = vld [vmem:[#allocation5 + $0x1e4] sm:$0xf]
    %v291 = vld [vmem:[#allocation5 + $0x1e8] sm:$0xf]
    %v292 = vld [vmem:[#allocation5 + $0x1ec] sm:$0xf]
    %v293 = vld [vmem:[#allocation5 + $0x1f0] sm:$0xf]
    %v294 = vld [vmem:[#allocation5 + $0x1f4] sm:$0xf]
    %v295 = vld [vmem:[#allocation5 + $0x1f8] sm:$0xf]
    %v296 = vld [vmem:[#allocation5 + $0x1fc] sm:$0xf]
    %v297 = vld [vmem:[#allocation5 + $0x200] sm:$0xf]
    %v298 = vld [vmem:[#allocation5 + $0x204] sm:$0xf]
    %v299 = vld [vmem:[#allocation5 + $0x208] sm:$0xf]
    %v300 = vld [vmem:[#allocation5 + $0x20c] sm:$0xf]
    %v301 = vld [vmem:[#allocation5 + $0x210] sm:$0xf]
    %v302 = vld [vmem:[#allocation5 + $0x214] sm:$0xf]
    %v303 = vld [vmem:[#allocation5 + $0x218] sm:$0xf]
    %v304 = vld [vmem:[#allocation5 + $0x21c] sm:$0xf]
    %v305 = vld [vmem:[#allocation5 + $0x220] sm:$0xf]
    %v306 = vld [vmem:[#allocation5 + $0x224] sm:$0xf]
    %v307 = vld [vmem:[#allocation5 + $0x228] sm:$0xf]
    %v308 = vld [vmem:[#allocation5 + $0x22c] sm:$0xf]
    %v309 = vld [vmem:[#allocation5 + $0x230] sm:$0xf]
    %v310 = vld [vmem:[#allocation5 + $0x234] sm:$0xf]
    %v311 = vld [vmem:[#allocation5 + $0x238] sm:$0xf]
    %v312 = vld [vmem:[#allocation5 + $0x23c] sm:$0xf]
    %v313 = vld [vmem:[#allocation5 + $0x240] sm:$0xf]
    %v314 = vld [vmem:[#allocation5 + $0x244] sm:$0xf]
    %v315 = vld [vmem:[#allocation5 + $0x248] sm:$0xf]
    %v316 = vld [vmem:[#allocation5 + $0x24c] sm:$0xf]
    %v317 = vld [vmem:[#allocation5 + $0x250] sm:$0xf]
    %v318 = vld [vmem:[#allocation5 + $0x254] sm:$0xf]
    %v319 = vld [vmem:[#allocation5 + $0x258] sm:$0xf]
    %v320 = vld [vmem:[#allocation5 + $0x25c] sm:$0xf]
    %v321 = vld [vmem:[#allocation5 + $0x260] sm:$0xf]
    %v322 = vld [vmem:[#allocation5 + $0x264] sm:$0xf]
    %v323 = vld [vmem:[#allocation5 + $0x268] sm:$0xf]
    %v324 = vld [vmem:[#allocation5 + $0x26c] sm:$0xf]
    %v325 = vld [vmem:[#allocation5 + $0x270] sm:$0xf]
    %v326 = vld [vmem:[#allocation5 + $0x274] sm:$0xf]
    %v327 = vld [vmem:[#allocation5 + $0x278] sm:$0xf]
    %v328 = vld [vmem:[#allocation5 + $0x27c] sm:$0xf]
    %v329 = vld [vmem:[#allocation5 + $0x280] sm:$0xf]
    %v330 = vld [vmem:[#allocation5 + $0x284] sm:$0xf]
    %v331 = vld [vmem:[#allocation5 + $0x288] sm:$0xf]
    %v332 = vld [vmem:[#allocation5 + $0x28c] sm:$0xf]
    %v333 = vld [vmem:[#allocation5 + $0x290] sm:$0xf]
    %v334 = vld [vmem:[#allocation5 + $0x294] sm:$0xf]
    %v335 = vld [vmem:[#allocation5 + $0x298] sm:$0xf]
    %v336 = vld [vmem:[#allocation5 + $0x29c] sm:$0xf]
    %v337 = vld [vmem:[#allocation5 + $0x2a0] sm:$0xf]
    %v338 = vld [vmem:[#allocation5 + $0x2a4] sm:$0xf]
    %v339 = vld [vmem:[#allocation5 + $0x2a8] sm:$0xf]
    %v340 = vld [vmem:[#allocation5 + $0x2ac] sm:$0xf]
    %v341 = vld [vmem:[#allocation5 + $0x2b0] sm:$0xf]
    %v342 = vld [vmem:[#allocation5 + $0x2b4] sm:$0xf]
    %v343 = vld [vmem:[#allocation5 + $0x2b8] sm:$0xf]
    %v344 = vld [vmem:[#allocation5 + $0x2bc] sm:$0xf]
    %v345 = vld [vmem:[#allocation5 + $0x2c0] sm:$0xf]
    %v346 = vld [vmem:[#allocation5 + $0x2c4] sm:$0xf]
    %v347 = vld [vmem:[#allocation5 + $0x2c8] sm:$0xf]
    %v348 = vld [vmem:[#allocation5 + $0x2cc] sm:$0xf]
    %v349 = vld [vmem:[#allocation5 + $0x2d0] sm:$0xf]
    %v350 = vld [vmem:[#allocation5 + $0x2d4] sm:$0xf]
    %v351 = vld [vmem:[#allocation5 + $0x2d8] sm:$0xf]
    %v352 = vld [vmem:[#allocation5 + $0x2dc] sm:$0xf]
    %v353 = vld [vmem:[#allocation5 + $0x2e0] sm:$0xf]
    %v354 = vld [vmem:[#allocation5 + $0x2e4] sm:$0xf]
    %v355 = vld [vmem:[#allocation5 + $0x2e8] sm:$0xf]
    %v356 = vld [vmem:[#allocation5 + $0x2ec] sm:$0xf]
    %v357 = vld [vmem:[#allocation5 + $0x2f0] sm:$0xf]
    %v358 = vld [vmem:[#allocation5 + $0x2f4] sm:$0xf]
    %v359 = vld [vmem:[#allocation5 + $0x2f8] sm:$0xf]
    %v360 = vld [vmem:[#allocation5 + $0x2fc] sm:$0xf]
    %v361 = vld [vmem:[#allocation5 + $0x300] sm:$0xf]
    %v362 = vld [vmem:[#allocation5 + $0x304] sm:$0xf]
    %v363 = vld [vmem:[#allocation5 + $0x308] sm:$0xf]
    %v364 = vld [vmem:[#allocation5 + $0x30c] sm:$0xf]
    %v365 = vld [vmem:[#allocation5 + $0x310] sm:$0xf]
    %v366 = vld [vmem:[#allocation5 + $0x314] sm:$0xf]
    %v367 = vld [vmem:[#allocation5 + $0x318] sm:$0xf]
    %v368 = vld [vmem:[#allocation5 + $0x31c] sm:$0xf]
    %v369 = vld [vmem:[#allocation5 + $0x320] sm:$0xf]
    %v370 = vld [vmem:[#allocation5 + $0x324] sm:$0xf]
    %v371 = vld [vmem:[#allocation5 + $0x328] sm:$0xf]
    %v372 = vld [vmem:[#allocation5 + $0x32c] sm:$0xf]
    %v373 = vld [vmem:[#allocation5 + $0x330] sm:$0xf]
    %v374 = vld [vmem:[#allocation5 + $0x334] sm:$0xf]
    %v375 = vld [vmem:[#allocation5 + $0x338] sm:$0xf]
    %v376 = vld [vmem:[#allocation5 + $0x33c] sm:$0xf]
    %v377 = vld [vmem:[#allocation5 + $0x340] sm:$0xf]
    %v378 = vld [vmem:[#allocation5 + $0x344] sm:$0xf]
    %v379 = vld [vmem:[#allocation5 + $0x348] sm:$0xf]
    %v380 = vld [vmem:[#allocation5 + $0x34c] sm:$0xf]
    %v381 = vld [vmem:[#allocation5 + $0x350] sm:$0xf]
    %v382 = vld [vmem:[#allocation5 + $0x354] sm:$0xf]
    %v383 = vld [vmem:[#allocation5 + $0x358] sm:$0xf]
    %v384 = vld [vmem:[#allocation5 + $0x35c] sm:$0xf]
    %v385 = vld [vmem:[#allocation5 + $0x360] sm:$0xf]
    %v386 = vld [vmem:[#allocation5 + $0x364] sm:$0xf]
    %v387 = vld [vmem:[#allocation5 + $0x368] sm:$0xf]
    %v388 = vld [vmem:[#allocation5 + $0x36c] sm:$0xf]
    %v389 = vld [vmem:[#allocation5 + $0x370] sm:$0xf]
    %v390 = vld [vmem:[#allocation5 + $0x374] sm:$0xf]
    %v391 = vld [vmem:[#allocation5 + $0x378] sm:$0xf]
    %v392 = vld [vmem:[#allocation5 + $0x37c] sm:$0xf]
    %v393 = vld [vmem:[#allocation5 + $0x380] sm:$0xf]
    %v394 = vld [vmem:[#allocation5 + $0x384] sm:$0xf]
    %v395 = vld [vmem:[#allocation5 + $0x388] sm:$0xf]
    %v396 = vld [vmem:[#allocation5 + $0x38c] sm:$0xf]
    %v397 = vld [vmem:[#allocation5 + $0x390] sm:$0xf]
    %v398 = vld [vmem:[#allocation5 + $0x394] sm:$0xf]
    %v399 = vld [vmem:[#allocation5 + $0x398] sm:$0xf]
    %v400 = vld [vmem:[#allocation5 + $0x39c] sm:$0xf]
    %v401 = vld [vmem:[#allocation5 + $0x3a0] sm:$0xf]
    %v402 = vld [vmem:[#allocation5 + $0x3a4] sm:$0xf]
    %v403 = vld [vmem:[#allocation5 + $0x3a8] sm:$0xf]
    %v404 = vld [vmem:[#allocation5 + $0x3ac] sm:$0xf]
    %v405 = vld [vmem:[#allocation5 + $0x3b0] sm:$0xf]
    %v406 = vld [vmem:[#allocation5 + $0x3b4] sm:$0xf]
    %v407 = vld [vmem:[#allocation5 + $0x3b8] sm:$0xf]
    %v408 = vld [vmem:[#allocation5 + $0x3bc] sm:$0xf]
    %v409 = vld [vmem:[#allocation5 + $0x3c0] sm:$0xf]
    %v410 = vld [vmem:[#allocation5 + $0x3c4] sm:$0xf]
    %v411 = vld [vmem:[#allocation5 + $0x3c8] sm:$0xf]
    %v412 = vld [vmem:[#allocation5 + $0x3cc] sm:$0xf]
    %v413 = vld [vmem:[#allocation5 + $0x3d0] sm:$0xf]
    %v414 = vld [vmem:[#allocation5 + $0x3d4] sm:$0xf]
    %v415 = vld [vmem:[#allocation5 + $0x3d8] sm:$0xf]
    %v416 = vld [vmem:[#allocation5 + $0x3dc] sm:$0xf]
    %v417 = vld [vmem:[#allocation5 + $0x3e0] sm:$0xf]
    %v418 = vld [vmem:[#allocation5 + $0x3e4] sm:$0xf]
    %v419 = vld [vmem:[#allocation5 + $0x3e8] sm:$0xf]
    %v420 = vld [vmem:[#allocation5 + $0x3ec] sm:$0xf]
    %v421 = vld [vmem:[#allocation5 + $0x3f0] sm:$0xf]
    %v422 = vld [vmem:[#allocation5 + $0x3f4] sm:$0xf]
    %v423 = vld [vmem:[#allocation5 + $0x3f8] sm:$0xf]
    %v424 = vld [vmem:[#allocation5 + $0x3fc] sm:$0xf]
    %v425 = vld [vmem:[%s2] sm:$0x1]
    %v427 = vlaneseq
    %v428 = vshrl.u32 %v427, 7
    %v429 = vsub.s32 0, %v428
    %v430 = vrot.slane %v425, %v429
    %v688 = vunpack.c.l.b16 %v169
    %v689 = vunpack.c.l.b16 %v170
    %v690 = vunpack.c.l.b16 %v171
    %v691 = vunpack.c.l.b16 %v172
    %v692 = vunpack.c.l.b16 %v173
    %v693 = vunpack.c.l.b16 %v174
    %v694 = vunpack.c.l.b16 %v175
    %v695 = vunpack.c.l.b16 %v176
    %v696 = vunpack.c.l.b16 %v177
    %v697 = vunpack.c.l.b16 %v178
    %v698 = vunpack.c.l.b16 %v179
    %v699 = vunpack.c.l.b16 %v180
    %v700 = vunpack.c.l.b16 %v181
    %v701 = vunpack.c.l.b16 %v182
    %v702 = vunpack.c.l.b16 %v183
    %v703 = vunpack.c.l.b16 %v184
    %v704 = vunpack.c.l.b16 %v185
    %v705 = vunpack.c.l.b16 %v186
    %v706 = vunpack.c.l.b16 %v187
    %v707 = vunpack.c.l.b16 %v188
    %v708 = vunpack.c.l.b16 %v189
    %v709 = vunpack.c.l.b16 %v190
    %v710 = vunpack.c.l.b16 %v191
    %v711 = vunpack.c.l.b16 %v192
    %v712 = vunpack.c.l.b16 %v193
    %v713 = vunpack.c.l.b16 %v194
    %v714 = vunpack.c.l.b16 %v195
    %v715 = vunpack.c.l.b16 %v196
    %v716 = vunpack.c.l.b16 %v197
    %v717 = vunpack.c.l.b16 %v198
    %v718 = vunpack.c.l.b16 %v199
    %v719 = vunpack.c.l.b16 %v200
    %v720 = vunpack.c.l.b16 %v201
    %v721 = vunpack.c.l.b16 %v202
    %v722 = vunpack.c.l.b16 %v203
    %v723 = vunpack.c.l.b16 %v204
    %v724 = vunpack.c.l.b16 %v205
    %v725 = vunpack.c.l.b16 %v206
    %v726 = vunpack.c.l.b16 %v207
    %v727 = vunpack.c.l.b16 %v208
    %v728 = vunpack.c.l.b16 %v209
    %v729 = vunpack.c.l.b16 %v210
    %v730 = vunpack.c.l.b16 %v211
    %v731 = vunpack.c.l.b16 %v212
    %v732 = vunpack.c.l.b16 %v213
    %v733 = vunpack.c.l.b16 %v214
    %v734 = vunpack.c.l.b16 %v215
    %v735 = vunpack.c.l.b16 %v216
    %v736 = vunpack.c.l.b16 %v217
    %v737 = vunpack.c.l.b16 %v218
    %v738 = vunpack.c.l.b16 %v219
    %v739 = vunpack.c.l.b16 %v220
    %v740 = vunpack.c.l.b16 %v221
    %v741 = vunpack.c.l.b16 %v222
    %v742 = vunpack.c.l.b16 %v223
    %v743 = vunpack.c.l.b16 %v224
    %v744 = vunpack.c.l.b16 %v225
    %v745 = vunpack.c.l.b16 %v226
    %v746 = vunpack.c.l.b16 %v227
    %v747 = vunpack.c.l.b16 %v228
    %v748 = vunpack.c.l.b16 %v229
    %v749 = vunpack.c.l.b16 %v230
    %v750 = vunpack.c.l.b16 %v231
    %v751 = vunpack.c.l.b16 %v232
    %v752 = vunpack.c.l.b16 %v233
    %v753 = vunpack.c.l.b16 %v234
    %v754 = vunpack.c.l.b16 %v235
    %v755 = vunpack.c.l.b16 %v236
    %v756 = vunpack.c.l.b16 %v237
    %v757 = vunpack.c.l.b16 %v238
    %v758 = vunpack.c.l.b16 %v239
    %v759 = vunpack.c.l.b16 %v240
    %v760 = vunpack.c.l.b16 %v241
    %v761 = vunpack.c.l.b16 %v242
    %v762 = vunpack.c.l.b16 %v243
    %v763 = vunpack.c.l.b16 %v244
    %v764 = vunpack.c.l.b16 %v245
    %v765 = vunpack.c.l.b16 %v246
    %v766 = vunpack.c.l.b16 %v247
    %v767 = vunpack.c.l.b16 %v248
    %v768 = vunpack.c.l.b16 %v249
    %v769 = vunpack.c.l.b16 %v250
    %v770 = vunpack.c.l.b16 %v251
    %v771 = vunpack.c.l.b16 %v252
    %v772 = vunpack.c.l.b16 %v253
    %v773 = vunpack.c.l.b16 %v254
    %v774 = vunpack.c.l.b16 %v255
    %v775 = vunpack.c.l.b16 %v256
    %v776 = vunpack.c.l.b16 %v257
    %v777 = vunpack.c.l.b16 %v258
    %v778 = vunpack.c.l.b16 %v259
    %v779 = vunpack.c.l.b16 %v260
    %v780 = vunpack.c.l.b16 %v261
    %v781 = vunpack.c.l.b16 %v262
    %v782 = vunpack.c.l.b16 %v263
    %v783 = vunpack.c.l.b16 %v264
    %v784 = vunpack.c.l.b16 %v265
    %v785 = vunpack.c.l.b16 %v266
    %v786 = vunpack.c.l.b16 %v267
    %v787 = vunpack.c.l.b16 %v268
    %v788 = vunpack.c.l.b16 %v269
    %v789 = vunpack.c.l.b16 %v270
    %v790 = vunpack.c.l.b16 %v271
    %v791 = vunpack.c.l.b16 %v272
    %v792 = vunpack.c.l.b16 %v273
    %v793 = vunpack.c.l.b16 %v274
    %v794 = vunpack.c.l.b16 %v275
    %v795 = vunpack.c.l.b16 %v276
    %v796 = vunpack.c.l.b16 %v277
    %v797 = vunpack.c.l.b16 %v278
    %v798 = vunpack.c.l.b16 %v279
    %v799 = vunpack.c.l.b16 %v280
    %v800 = vunpack.c.l.b16 %v281
    %v801 = vunpack.c.l.b16 %v282
    %v802 = vunpack.c.l.b16 %v283
    %v803 = vunpack.c.l.b16 %v284
    %v804 = vunpack.c.l.b16 %v285
    %v805 = vunpack.c.l.b16 %v286
    %v806 = vunpack.c.l.b16 %v287
    %v807 = vunpack.c.l.b16 %v288
    %v808 = vunpack.c.l.b16 %v289
    %v809 = vunpack.c.l.b16 %v290
    %v810 = vunpack.c.l.b16 %v291
    %v811 = vunpack.c.l.b16 %v292
    %v812 = vunpack.c.l.b16 %v293
    %v813 = vunpack.c.l.b16 %v294
    %v814 = vunpack.c.l.b16 %v295
    %v815 = vunpack.c.l.b16 %v296
    %v816 = vunpack.c.l.b16 %v297
    %v817 = vunpack.c.l.b16 %v298
    %v818 = vunpack.c.l.b16 %v299
    %v819 = vunpack.c.l.b16 %v300
    %v820 = vunpack.c.l.b16 %v301
    %v821 = vunpack.c.l.b16 %v302
    %v822 = vunpack.c.l.b16 %v303
    %v823 = vunpack.c.l.b16 %v304
    %v824 = vunpack.c.l.b16 %v305
    %v825 = vunpack.c.l.b16 %v306
    %v826 = vunpack.c.l.b16 %v307
    %v827 = vunpack.c.l.b16 %v308
    %v828 = vunpack.c.l.b16 %v309
    %v829 = vunpack.c.l.b16 %v310
    %v830 = vunpack.c.l.b16 %v311
    %v831 = vunpack.c.l.b16 %v312
    %v832 = vunpack.c.l.b16 %v313
    %v833 = vunpack.c.l.b16 %v314
    %v834 = vunpack.c.l.b16 %v315
    %v835 = vunpack.c.l.b16 %v316
    %v836 = vunpack.c.l.b16 %v317
    %v837 = vunpack.c.l.b16 %v318
    %v838 = vunpack.c.l.b16 %v319
    %v839 = vunpack.c.l.b16 %v320
    %v840 = vunpack.c.l.b16 %v321
    %v841 = vunpack.c.l.b16 %v322
    %v842 = vunpack.c.l.b16 %v323
    %v843 = vunpack.c.l.b16 %v324
    %v844 = vunpack.c.l.b16 %v325
    %v845 = vunpack.c.l.b16 %v326
    %v846 = vunpack.c.l.b16 %v327
    %v847 = vunpack.c.l.b16 %v328
    %v848 = vunpack.c.l.b16 %v329
    %v849 = vunpack.c.l.b16 %v330
    %v850 = vunpack.c.l.b16 %v331
    %v851 = vunpack.c.l.b16 %v332
    %v852 = vunpack.c.l.b16 %v333
    %v853 = vunpack.c.l.b16 %v334
    %v854 = vunpack.c.l.b16 %v335
    %v855 = vunpack.c.l.b16 %v336
    %v856 = vunpack.c.l.b16 %v337
    %v857 = vunpack.c.l.b16 %v338
    %v858 = vunpack.c.l.b16 %v339
    %v859 = vunpack.c.l.b16 %v340
    %v860 = vunpack.c.l.b16 %v341
    %v861 = vunpack.c.l.b16 %v342
    %v862 = vunpack.c.l.b16 %v343
    %v863 = vunpack.c.l.b16 %v344
    %v864 = vunpack.c.l.b16 %v345
    %v865 = vunpack.c.l.b16 %v346
    %v866 = vunpack.c.l.b16 %v347
    %v867 = vunpack.c.l.b16 %v348
    %v868 = vunpack.c.l.b16 %v349
    %v869 = vunpack.c.l.b16 %v350
    %v870 = vunpack.c.l.b16 %v351
    %v871 = vunpack.c.l.b16 %v352
    %v872 = vunpack.c.l.b16 %v353
    %v873 = vunpack.c.l.b16 %v354
    %v874 = vunpack.c.l.b16 %v355
    %v875 = vunpack.c.l.b16 %v356
    %v876 = vunpack.c.l.b16 %v357
    %v877 = vunpack.c.l.b16 %v358
    %v878 = vunpack.c.l.b16 %v359
    %v879 = vunpack.c.l.b16 %v360
    %v880 = vunpack.c.l.b16 %v361
    %v881 = vunpack.c.l.b16 %v362
    %v882 = vunpack.c.l.b16 %v363
    %v883 = vunpack.c.l.b16 %v364
    %v884 = vunpack.c.l.b16 %v365
    %v885 = vunpack.c.l.b16 %v366
    %v886 = vunpack.c.l.b16 %v367
    %v887 = vunpack.c.l.b16 %v368
    %v888 = vunpack.c.l.b16 %v369
    %v889 = vunpack.c.l.b16 %v370
    %v890 = vunpack.c.l.b16 %v371
    %v891 = vunpack.c.l.b16 %v372
    %v892 = vunpack.c.l.b16 %v373
    %v893 = vunpack.c.l.b16 %v374
    %v894 = vunpack.c.l.b16 %v375
    %v895 = vunpack.c.l.b16 %v376
    %v896 = vunpack.c.l.b16 %v377
    %v897 = vunpack.c.l.b16 %v378
    %v898 = vunpack.c.l.b16 %v379
    %v899 = vunpack.c.l.b16 %v380
    %v900 = vunpack.c.l.b16 %v381
    %v901 = vunpack.c.l.b16 %v382
    %v902 = vunpack.c.l.b16 %v383
    %v903 = vunpack.c.l.b16 %v384
    %v904 = vunpack.c.l.b16 %v385
    %v905 = vunpack.c.l.b16 %v386
    %v906 = vunpack.c.l.b16 %v387
    %v907 = vunpack.c.l.b16 %v388
    %v908 = vunpack.c.l.b16 %v389
    %v909 = vunpack.c.l.b16 %v390
    %v910 = vunpack.c.l.b16 %v391
    %v911 = vunpack.c.l.b16 %v392
    %v912 = vunpack.c.l.b16 %v393
    %v913 = vunpack.c.l.b16 %v394
    %v914 = vunpack.c.l.b16 %v395
    %v915 = vunpack.c.l.b16 %v396
    %v916 = vunpack.c.l.b16 %v397
    %v917 = vunpack.c.l.b16 %v398
    %v918 = vunpack.c.l.b16 %v399
    %v919 = vunpack.c.l.b16 %v400
    %v920 = vunpack.c.l.b16 %v401
    %v921 = vunpack.c.l.b16 %v402
    %v922 = vunpack.c.l.b16 %v403
    %v923 = vunpack.c.l.b16 %v404
    %v924 = vunpack.c.l.b16 %v405
    %v925 = vunpack.c.l.b16 %v406
    %v926 = vunpack.c.l.b16 %v407
    %v927 = vunpack.c.l.b16 %v408
    %v928 = vunpack.c.l.b16 %v409
    %v929 = vunpack.c.l.b16 %v410
    %v930 = vunpack.c.l.b16 %v411
    %v931 = vunpack.c.l.b16 %v412
    %v932 = vunpack.c.l.b16 %v413
    %v933 = vunpack.c.l.b16 %v414
    %v934 = vunpack.c.l.b16 %v415
    %v935 = vunpack.c.l.b16 %v416
    %v936 = vunpack.c.l.b16 %v417
    %v937 = vunpack.c.l.b16 %v418
    %v938 = vunpack.c.l.b16 %v419
    %v939 = vunpack.c.l.b16 %v420
    %v940 = vunpack.c.l.b16 %v421
    %v941 = vunpack.c.l.b16 %v422
    %v942 = vunpack.c.l.b16 %v423
    %v943 = vunpack.c.l.b16 %v424
    %v944 = vpack.c.b16 %v689, %v688
    %v945 = vpack.c.b16 %v691, %v690
    %v946 = vpack.c.b16 %v693, %v692
    %v947 = vpack.c.b16 %v695, %v694
    %v948 = vpack.c.b16 %v697, %v696
    %v949 = vpack.c.b16 %v699, %v698
    %v950 = vpack.c.b16 %v701, %v700
    %v951 = vpack.c.b16 %v703, %v702
    %v952 = vpack.c.b16 %v705, %v704
    %v953 = vpack.c.b16 %v707, %v706
    %v954 = vpack.c.b16 %v709, %v708
    %v955 = vpack.c.b16 %v711, %v710
    %v956 = vpack.c.b16 %v713, %v712
    %v957 = vpack.c.b16 %v715, %v714
    %v958 = vpack.c.b16 %v717, %v716
    %v959 = vpack.c.b16 %v719, %v718
    %v960 = vpack.c.b16 %v721, %v720
    %v961 = vpack.c.b16 %v723, %v722
    %v962 = vpack.c.b16 %v725, %v724
    %v963 = vpack.c.b16 %v727, %v726
    %v964 = vpack.c.b16 %v729, %v728
    %v965 = vpack.c.b16 %v731, %v730
    %v966 = vpack.c.b16 %v733, %v732
    %v967 = vpack.c.b16 %v735, %v734
    %v968 = vpack.c.b16 %v737, %v736
    %v969 = vpack.c.b16 %v739, %v738
    %v970 = vpack.c.b16 %v741, %v740
    %v971 = vpack.c.b16 %v743, %v742
    %v972 = vpack.c.b16 %v745, %v744
    %v973 = vpack.c.b16 %v747, %v746
    %v974 = vpack.c.b16 %v749, %v748
    %v975 = vpack.c.b16 %v751, %v750
    %v976 = vpack.c.b16 %v753, %v752
    %v977 = vpack.c.b16 %v755, %v754
    %v978 = vpack.c.b16 %v757, %v756
    %v979 = vpack.c.b16 %v759, %v758
    %v980 = vpack.c.b16 %v761, %v760
    %v981 = vpack.c.b16 %v763, %v762
    %v982 = vpack.c.b16 %v765, %v764
    %v983 = vpack.c.b16 %v767, %v766
    %v984 = vpack.c.b16 %v769, %v768
    %v985 = vpack.c.b16 %v771, %v770
    %v986 = vpack.c.b16 %v773, %v772
    %v987 = vpack.c.b16 %v775, %v774
    %v988 = vpack.c.b16 %v777, %v776
    %v989 = vpack.c.b16 %v779, %v778
    %v990 = vpack.c.b16 %v781, %v780
    %v991 = vpack.c.b16 %v783, %v782
    %v992 = vpack.c.b16 %v785, %v784
    %v993 = vpack.c.b16 %v787, %v786
    %v994 = vpack.c.b16 %v789, %v788
    %v995 = vpack.c.b16 %v791, %v790
    %v996 = vpack.c.b16 %v793, %v792
    %v997 = vpack.c.b16 %v795, %v794
    %v998 = vpack.c.b16 %v797, %v796
    %v999 = vpack.c.b16 %v799, %v798
    %v1000 = vpack.c.b16 %v801, %v800
    %v1001 = vpack.c.b16 %v803, %v802
    %v1002 = vpack.c.b16 %v805, %v804
    %v1003 = vpack.c.b16 %v807, %v806
    %v1004 = vpack.c.b16 %v809, %v808
    %v1005 = vpack.c.b16 %v811, %v810
    %v1006 = vpack.c.b16 %v813, %v812
    %v1007 = vpack.c.b16 %v815, %v814
    %v1008 = vpack.c.b16 %v817, %v816
    %v1009 = vpack.c.b16 %v819, %v818
    %v1010 = vpack.c.b16 %v821, %v820
    %v1011 = vpack.c.b16 %v823, %v822
    %v1012 = vpack.c.b16 %v825, %v824
    %v1013 = vpack.c.b16 %v827, %v826
    %v1014 = vpack.c.b16 %v829, %v828
    %v1015 = vpack.c.b16 %v831, %v830
    %v1016 = vpack.c.b16 %v833, %v832
    %v1017 = vpack.c.b16 %v835, %v834
    %v1018 = vpack.c.b16 %v837, %v836
    %v1019 = vpack.c.b16 %v839, %v838
    %v1020 = vpack.c.b16 %v841, %v840
    %v1021 = vpack.c.b16 %v843, %v842
    %v1022 = vpack.c.b16 %v845, %v844
    %v1023 = vpack.c.b16 %v847, %v846
    %v1024 = vpack.c.b16 %v849, %v848
    %v1025 = vpack.c.b16 %v851, %v850
    %v1026 = vpack.c.b16 %v853, %v852
    %v1027 = vpack.c.b16 %v855, %v854
    %v1028 = vpack.c.b16 %v857, %v856
    %v1029 = vpack.c.b16 %v859, %v858
    %v1030 = vpack.c.b16 %v861, %v860
    %v1031 = vpack.c.b16 %v863, %v862
    %v1032 = vpack.c.b16 %v865, %v864
    %v1033 = vpack.c.b16 %v867, %v866
    %v1034 = vpack.c.b16 %v869, %v868
    %v1035 = vpack.c.b16 %v871, %v870
    %v1036 = vpack.c.b16 %v873, %v872
    %v1037 = vpack.c.b16 %v875, %v874
    %v1038 = vpack.c.b16 %v877, %v876
    %v1039 = vpack.c.b16 %v879, %v878
    %v1040 = vpack.c.b16 %v881, %v880
    %v1041 = vpack.c.b16 %v883, %v882
    %v1042 = vpack.c.b16 %v885, %v884
    %v1043 = vpack.c.b16 %v887, %v886
    %v1044 = vpack.c.b16 %v889, %v888
    %v1045 = vpack.c.b16 %v891, %v890
    %v1046 = vpack.c.b16 %v893, %v892
    %v1047 = vpack.c.b16 %v895, %v894
    %v1048 = vpack.c.b16 %v897, %v896
    %v1049 = vpack.c.b16 %v899, %v898
    %v1050 = vpack.c.b16 %v901, %v900
    %v1051 = vpack.c.b16 %v903, %v902
    %v1052 = vpack.c.b16 %v905, %v904
    %v1053 = vpack.c.b16 %v907, %v906
    %v1054 = vpack.c.b16 %v909, %v908
    %v1055 = vpack.c.b16 %v911, %v910
    %v1056 = vpack.c.b16 %v913, %v912
    %v1057 = vpack.c.b16 %v915, %v914
    %v1058 = vpack.c.b16 %v917, %v916
    %v1059 = vpack.c.b16 %v919, %v918
    %v1060 = vpack.c.b16 %v921, %v920
    %v1061 = vpack.c.b16 %v923, %v922
    %v1062 = vpack.c.b16 %v925, %v924
    %v1063 = vpack.c.b16 %v927, %v926
    %v1064 = vpack.c.b16 %v929, %v928
    %v1065 = vpack.c.b16 %v931, %v930
    %v1066 = vpack.c.b16 %v933, %v932
    %v1067 = vpack.c.b16 %v935, %v934
    %v1068 = vpack.c.b16 %v937, %v936
    %v1069 = vpack.c.b16 %v939, %v938
    %v1070 = vpack.c.b16 %v941, %v940
    %v1071 = vpack.c.b16 %v943, %v942
    %1200 = vmatprep.subr.bf16.mxu0 0
    %1201 = vmatpush1.bf16.msra.mxu0 %v951
    %1202 = vmatprep.subr.bf16.mxu0 0
    %1203 = vmatpush1.bf16.msra.mxu0 %v950
    %1204 = vmatprep.subr.bf16.mxu0 0
    %1205 = vmatpush1.bf16.msra.mxu0 %v949
    %1206 = vmatprep.subr.bf16.mxu0 0
    %1207 = vmatpush1.bf16.msra.mxu0 %v948
    %1208 = vmatprep.subr.bf16.mxu0 0
    %1209 = vmatpush1.bf16.msra.mxu0 %v947
    %1210 = vmatprep.subr.bf16.mxu0 0
    %1211 = vmatpush1.bf16.msra.mxu0 %v946
    %1212 = vmatprep.subr.bf16.mxu0 0
    %1213 = vmatpush1.bf16.msra.mxu0 %v945
    %1214 = vmatprep.subr.bf16.mxu0 0
    %1215 = vmatpush1.bf16.msra.mxu0 %v944
    %1216 = vmatprep.subr.bf16.mxu0 0
    %1217 = vmatpush2.bf16.msra.mxu0 %v959
    %1218 = vmatprep.subr.bf16.mxu0 0
    %1219 = vmatpush2.bf16.msra.mxu0 %v958
    %1220 = vmatprep.subr.bf16.mxu0 0
    %1221 = vmatpush2.bf16.msra.mxu0 %v957
    %1222 = vmatprep.subr.bf16.mxu0 0
    %1223 = vmatpush2.bf16.msra.mxu0 %v956
    %1224 = vmatprep.subr.bf16.mxu0 0
    %1225 = vmatpush2.bf16.msra.mxu0 %v955
    %1226 = vmatprep.subr.bf16.mxu0 0
    %1227 = vmatpush2.bf16.msra.mxu0 %v954
    %1228 = vmatprep.subr.bf16.mxu0 0
    %1229 = vmatpush2.bf16.msra.mxu0 %v953
    %1230 = vmatprep.subr.bf16.mxu0 0
    %1231 = vmatpush2.bf16.msra.mxu0 %v952
    %1232 = vmatprep.mubr.bf16.mxu0 %v154
    %1233 = vmatmul.mubr.bf16.gmra.mxu0 %v153
    %v1234 = vpop.f32.mrf.mxu0
    %v1235 = vadd.f32 %v430, %v1234
    %v1236 = vpop.f32.mrf.mxu0
    %v1237 = vpop.f32.mrf.mxu0
    %v1238 = vpop.f32.mrf.mxu0
    %1239 = vdwg.mxu0
    %1240 = vmatprep.subr.bf16.mxu0 0
    %1241 = vmatpush1.bf16.msra.mxu0 %v967
    %1242 = vmatprep.subr.bf16.mxu0 0
    %1243 = vmatpush1.bf16.msra.mxu0 %v966
    %1244 = vmatprep.subr.bf16.mxu0 0
    %1245 = vmatpush1.bf16.msra.mxu0 %v965
    %1246 = vmatprep.subr.bf16.mxu0 0
    %1247 = vmatpush1.bf16.msra.mxu0 %v964
    %1248 = vmatprep.subr.bf16.mxu0 0
    %1249 = vmatpush1.bf16.msra.mxu0 %v963
    %1250 = vmatprep.subr.bf16.mxu0 0
    %1251 = vmatpush1.bf16.msra.mxu0 %v962
    %1252 = vmatprep.subr.bf16.mxu0 0
    %1253 = vmatpush1.bf16.msra.mxu0 %v961
    %1254 = vmatprep.subr.bf16.mxu0 0
    %1255 = vmatpush1.bf16.msra.mxu0 %v960
    %1256 = vmatprep.subr.bf16.mxu0 0
    %1257 = vmatpush2.bf16.msra.mxu0 %v975
    %1258 = vmatprep.subr.bf16.mxu0 0
    %1259 = vmatpush2.bf16.msra.mxu0 %v974
    %1260 = vmatprep.subr.bf16.mxu0 0
    %1261 = vmatpush2.bf16.msra.mxu0 %v973
    %1262 = vmatprep.subr.bf16.mxu0 0
    %1263 = vmatpush2.bf16.msra.mxu0 %v972
    %1264 = vmatprep.subr.bf16.mxu0 0
    %1265 = vmatpush2.bf16.msra.mxu0 %v971
    %1266 = vmatprep.subr.bf16.mxu0 0
    %1267 = vmatpush2.bf16.msra.mxu0 %v970
    %1268 = vmatprep.subr.bf16.mxu0 0
    %1269 = vmatpush2.bf16.msra.mxu0 %v969
    %1270 = vmatprep.subr.bf16.mxu0 0
    %1271 = vmatpush2.bf16.msra.mxu0 %v968
    %1272 = vmatprep.mubr.bf16.mxu0 %v156
    %1273 = vmatmul.mubr.bf16.gmra.mxu0 %v155
    %v1274 = vpop.f32.mrf.mxu0
    %v1275 = vadd.f32 %v1235, %v1274
    %v1276 = vpop.f32.mrf.mxu0
    %v1277 = vpop.f32.mrf.mxu0
    %v1278 = vpop.f32.mrf.mxu0
    %1279 = vdwg.mxu0
    %1280 = vmatprep.subr.bf16.mxu0 0
    %1281 = vmatpush1.bf16.msra.mxu0 %v983
    %1282 = vmatprep.subr.bf16.mxu0 0
    %1283 = vmatpush1.bf16.msra.mxu0 %v982
    %1284 = vmatprep.subr.bf16.mxu0 0
    %1285 = vmatpush1.bf16.msra.mxu0 %v981
    %1286 = vmatprep.subr.bf16.mxu0 0
    %1287 = vmatpush1.bf16.msra.mxu0 %v980
    %1288 = vmatprep.subr.bf16.mxu0 0
    %1289 = vmatpush1.bf16.msra.mxu0 %v979
    %1290 = vmatprep.subr.bf16.mxu0 0
    %1291 = vmatpush1.bf16.msra.mxu0 %v978
    %1292 = vmatprep.subr.bf16.mxu0 0
    %1293 = vmatpush1.bf16.msra.mxu0 %v977
    %1294 = vmatprep.subr.bf16.mxu0 0
    %1295 = vmatpush1.bf16.msra.mxu0 %v976
    %1296 = vmatprep.subr.bf16.mxu0 0
    %1297 = vmatpush2.bf16.msra.mxu0 %v991
    %1298 = vmatprep.subr.bf16.mxu0 0
    %1299 = vmatpush2.bf16.msra.mxu0 %v990
    %1300 = vmatprep.subr.bf16.mxu0 0
    %1301 = vmatpush2.bf16.msra.mxu0 %v989
    %1302 = vmatprep.subr.bf16.mxu0 0
    %1303 = vmatpush2.bf16.msra.mxu0 %v988
    %1304 = vmatprep.subr.bf16.mxu0 0
    %1305 = vmatpush2.bf16.msra.mxu0 %v987
    %1306 = vmatprep.subr.bf16.mxu0 0
    %1307 = vmatpush2.bf16.msra.mxu0 %v986
    %1308 = vmatprep.subr.bf16.mxu0 0
    %1309 = vmatpush2.bf16.msra.mxu0 %v985
    %1310 = vmatprep.subr.bf16.mxu0 0
    %1311 = vmatpush2.bf16.msra.mxu0 %v984
    %1312 = vmatprep.mubr.bf16.mxu0 %v158
    %1313 = vmatmul.mubr.bf16.gmra.mxu0 %v157
    %v1314 = vpop.f32.mrf.mxu0
    %v1315 = vadd.f32 %v1275, %v1314
    %v1316 = vpop.f32.mrf.mxu0
    %v1317 = vpop.f32.mrf.mxu0
    %v1318 = vpop.f32.mrf.mxu0
    %1319 = vdwg.mxu0
    %1320 = vmatprep.subr.bf16.mxu0 0
    %1321 = vmatpush1.bf16.msra.mxu0 %v999
    %1322 = vmatprep.subr.bf16.mxu0 0
    %1323 = vmatpush1.bf16.msra.mxu0 %v998
    %1324 = vmatprep.subr.bf16.mxu0 0
    %1325 = vmatpush1.bf16.msra.mxu0 %v997
    %1326 = vmatprep.subr.bf16.mxu0 0
    %1327 = vmatpush1.bf16.msra.mxu0 %v996
    %1328 = vmatprep.subr.bf16.mxu0 0
    %1329 = vmatpush1.bf16.msra.mxu0 %v995
    %1330 = vmatprep.subr.bf16.mxu0 0
    %1331 = vmatpush1.bf16.msra.mxu0 %v994
    %1332 = vmatprep.subr.bf16.mxu0 0
    %1333 = vmatpush1.bf16.msra.mxu0 %v993
    %1334 = vmatprep.subr.bf16.mxu0 0
    %1335 = vmatpush1.bf16.msra.mxu0 %v992
    %1336 = vmatprep.subr.bf16.mxu0 0
    %1337 = vmatpush2.bf16.msra.mxu0 %v1007
    %1338 = vmatprep.subr.bf16.mxu0 0
    %1339 = vmatpush2.bf16.msra.mxu0 %v1006
    %1340 = vmatprep.subr.bf16.mxu0 0
    %1341 = vmatpush2.bf16.msra.mxu0 %v1005
    %1342 = vmatprep.subr.bf16.mxu0 0
    %1343 = vmatpush2.bf16.msra.mxu0 %v1004
    %1344 = vmatprep.subr.bf16.mxu0 0
    %1345 = vmatpush2.bf16.msra.mxu0 %v1003
    %1346 = vmatprep.subr.bf16.mxu0 0
    %1347 = vmatpush2.bf16.msra.mxu0 %v1002
    %1348 = vmatprep.subr.bf16.mxu0 0
    %1349 = vmatpush2.bf16.msra.mxu0 %v1001
    %1350 = vmatprep.subr.bf16.mxu0 0
    %1351 = vmatpush2.bf16.msra.mxu0 %v1000
    %1352 = vmatprep.mubr.bf16.mxu0 %v160
    %1353 = vmatmul.mubr.bf16.gmra.mxu0 %v159
    %v1354 = vpop.f32.mrf.mxu0
    %v1355 = vadd.f32 %v1315, %v1354
    %v1356 = vpop.f32.mrf.mxu0
    %v1357 = vpop.f32.mrf.mxu0
    %v1358 = vpop.f32.mrf.mxu0
    %1359 = vdwg.mxu0
    %1360 = vmatprep.subr.bf16.mxu0 0
    %1361 = vmatpush1.bf16.msra.mxu0 %v1015
    %1362 = vmatprep.subr.bf16.mxu0 0
    %1363 = vmatpush1.bf16.msra.mxu0 %v1014
    %1364 = vmatprep.subr.bf16.mxu0 0
    %1365 = vmatpush1.bf16.msra.mxu0 %v1013
    %1366 = vmatprep.subr.bf16.mxu0 0
    %1367 = vmatpush1.bf16.msra.mxu0 %v1012
    %1368 = vmatprep.subr.bf16.mxu0 0
    %1369 = vmatpush1.bf16.msra.mxu0 %v1011
    %1370 = vmatprep.subr.bf16.mxu0 0
    %1371 = vmatpush1.bf16.msra.mxu0 %v1010
    %1372 = vmatprep.subr.bf16.mxu0 0
    %1373 = vmatpush1.bf16.msra.mxu0 %v1009
    %1374 = vmatprep.subr.bf16.mxu0 0
    %1375 = vmatpush1.bf16.msra.mxu0 %v1008
    %1376 = vmatprep.subr.bf16.mxu0 0
    %1377 = vmatpush2.bf16.msra.mxu0 %v1023
    %1378 = vmatprep.subr.bf16.mxu0 0
    %1379 = vmatpush2.bf16.msra.mxu0 %v1022
    %1380 = vmatprep.subr.bf16.mxu0 0
    %1381 = vmatpush2.bf16.msra.mxu0 %v1021
    %1382 = vmatprep.subr.bf16.mxu0 0
    %1383 = vmatpush2.bf16.msra.mxu0 %v1020
    %1384 = vmatprep.subr.bf16.mxu0 0
    %1385 = vmatpush2.bf16.msra.mxu0 %v1019
    %1386 = vmatprep.subr.bf16.mxu0 0
    %1387 = vmatpush2.bf16.msra.mxu0 %v1018
    %1388 = vmatprep.subr.bf16.mxu0 0
    %1389 = vmatpush2.bf16.msra.mxu0 %v1017
    %1390 = vmatprep.subr.bf16.mxu0 0
    %1391 = vmatpush2.bf16.msra.mxu0 %v1016
    %1392 = vmatprep.mubr.bf16.mxu0 %v162
    %1393 = vmatmul.mubr.bf16.gmra.mxu0 %v161
    %v1394 = vpop.f32.mrf.mxu0
    %v1395 = vadd.f32 %v1355, %v1394
    %v1396 = vpop.f32.mrf.mxu0
    %v1397 = vpop.f32.mrf.mxu0
    %v1398 = vpop.f32.mrf.mxu0
    %1399 = vdwg.mxu0
    %1400 = vmatprep.subr.bf16.mxu0 0
    %1401 = vmatpush1.bf16.msra.mxu0 %v1031
    %1402 = vmatprep.subr.bf16.mxu0 0
    %1403 = vmatpush1.bf16.msra.mxu0 %v1030
    %1404 = vmatprep.subr.bf16.mxu0 0
    %1405 = vmatpush1.bf16.msra.mxu0 %v1029
    %1406 = vmatprep.subr.bf16.mxu0 0
    %1407 = vmatpush1.bf16.msra.mxu0 %v1028
    %1408 = vmatprep.subr.bf16.mxu0 0
    %1409 = vmatpush1.bf16.msra.mxu0 %v1027
    %1410 = vmatprep.subr.bf16.mxu0 0
    %1411 = vmatpush1.bf16.msra.mxu0 %v1026
    %1412 = vmatprep.subr.bf16.mxu0 0
    %1413 = vmatpush1.bf16.msra.mxu0 %v1025
    %1414 = vmatprep.subr.bf16.mxu0 0
    %1415 = vmatpush1.bf16.msra.mxu0 %v1024
    %1416 = vmatprep.subr.bf16.mxu0 0
    %1417 = vmatpush2.bf16.msra.mxu0 %v1039
    %1418 = vmatprep.subr.bf16.mxu0 0
    %1419 = vmatpush2.bf16.msra.mxu0 %v1038
    %1420 = vmatprep.subr.bf16.mxu0 0
    %1421 = vmatpush2.bf16.msra.mxu0 %v1037
    %1422 = vmatprep.subr.bf16.mxu0 0
    %1423 = vmatpush2.bf16.msra.mxu0 %v1036
    %1424 = vmatprep.subr.bf16.mxu0 0
    %1425 = vmatpush2.bf16.msra.mxu0 %v1035
    %1426 = vmatprep.subr.bf16.mxu0 0
    %1427 = vmatpush2.bf16.msra.mxu0 %v1034
    %1428 = vmatprep.subr.bf16.mxu0 0
    %1429 = vmatpush2.bf16.msra.mxu0 %v1033
    %1430 = vmatprep.subr.bf16.mxu0 0
    %1431 = vmatpush2.bf16.msra.mxu0 %v1032
    %1432 = vmatprep.mubr.bf16.mxu0 %v164
    %1433 = vmatmul.mubr.bf16.gmra.mxu0 %v163
    %v1434 = vpop.f32.mrf.mxu0
    %v1435 = vadd.f32 %v1395, %v1434
    %v1436 = vpop.f32.mrf.mxu0
    %v1437 = vpop.f32.mrf.mxu0
    %v1438 = vpop.f32.mrf.mxu0
    %1439 = vdwg.mxu0
    %1440 = vmatprep.subr.bf16.mxu0 0
    %1441 = vmatpush1.bf16.msra.mxu0 %v1047
    %1442 = vmatprep.subr.bf16.mxu0 0
    %1443 = vmatpush1.bf16.msra.mxu0 %v1046
    %1444 = vmatprep.subr.bf16.mxu0 0
    %1445 = vmatpush1.bf16.msra.mxu0 %v1045
    %1446 = vmatprep.subr.bf16.mxu0 0
    %1447 = vmatpush1.bf16.msra.mxu0 %v1044
    %1448 = vmatprep.subr.bf16.mxu0 0
    %1449 = vmatpush1.bf16.msra.mxu0 %v1043
    %1450 = vmatprep.subr.bf16.mxu0 0
    %1451 = vmatpush1.bf16.msra.mxu0 %v1042
    %1452 = vmatprep.subr.bf16.mxu0 0
    %1453 = vmatpush1.bf16.msra.mxu0 %v1041
    %1454 = vmatprep.subr.bf16.mxu0 0
    %1455 = vmatpush1.bf16.msra.mxu0 %v1040
    %1456 = vmatprep.subr.bf16.mxu0 0
    %1457 = vmatpush2.bf16.msra.mxu0 %v1055
    %1458 = vmatprep.subr.bf16.mxu0 0
    %1459 = vmatpush2.bf16.msra.mxu0 %v1054
    %1460 = vmatprep.subr.bf16.mxu0 0
    %1461 = vmatpush2.bf16.msra.mxu0 %v1053
    %1462 = vmatprep.subr.bf16.mxu0 0
    %1463 = vmatpush2.bf16.msra.mxu0 %v1052
    %1464 = vmatprep.subr.bf16.mxu0 0
    %1465 = vmatpush2.bf16.msra.mxu0 %v1051
    %1466 = vmatprep.subr.bf16.mxu0 0
    %1467 = vmatpush2.bf16.msra.mxu0 %v1050
    %1468 = vmatprep.subr.bf16.mxu0 0
    %1469 = vmatpush2.bf16.msra.mxu0 %v1049
    %1470 = vmatprep.subr.bf16.mxu0 0
    %1471 = vmatpush2.bf16.msra.mxu0 %v1048
    %1472 = vmatprep.mubr.bf16.mxu0 %v166
    %1473 = vmatmul.mubr.bf16.gmra.mxu0 %v165
    %v1474 = vpop.f32.mrf.mxu0
    %v1475 = vadd.f32 %v1435, %v1474
    %v1476 = vpop.f32.mrf.mxu0
    %v1477 = vpop.f32.mrf.mxu0
    %v1478 = vpop.f32.mrf.mxu0
    %1479 = vdwg.mxu0
    %1480 = vmatprep.subr.bf16.mxu0 0
    %1481 = vmatpush1.bf16.msra.mxu0 %v1063
    %1482 = vmatprep.subr.bf16.mxu0 0
    %1483 = vmatpush1.bf16.msra.mxu0 %v1062
    %1484 = vmatprep.subr.bf16.mxu0 0
    %1485 = vmatpush1.bf16.msra.mxu0 %v1061
    %1486 = vmatprep.subr.bf16.mxu0 0
    %1487 = vmatpush1.bf16.msra.mxu0 %v1060
    %1488 = vmatprep.subr.bf16.mxu0 0
    %1489 = vmatpush1.bf16.msra.mxu0 %v1059
    %1490 = vmatprep.subr.bf16.mxu0 0
    %1491 = vmatpush1.bf16.msra.mxu0 %v1058
    %1492 = vmatprep.subr.bf16.mxu0 0
    %1493 = vmatpush1.bf16.msra.mxu0 %v1057
    %1494 = vmatprep.subr.bf16.mxu0 0
    %1495 = vmatpush1.bf16.msra.mxu0 %v1056
    %1496 = vmatprep.subr.bf16.mxu0 0
    %1497 = vmatpush2.bf16.msra.mxu0 %v1071
    %1498 = vmatprep.subr.bf16.mxu0 0
    %1499 = vmatpush2.bf16.msra.mxu0 %v1070
    %1500 = vmatprep.subr.bf16.mxu0 0
    %1501 = vmatpush2.bf16.msra.mxu0 %v1069
    %1502 = vmatprep.subr.bf16.mxu0 0
    %1503 = vmatpush2.bf16.msra.mxu0 %v1068
    %1504 = vmatprep.subr.bf16.mxu0 0
    %1505 = vmatpush2.bf16.msra.mxu0 %v1067
    %1506 = vmatprep.subr.bf16.mxu0 0
    %1507 = vmatpush2.bf16.msra.mxu0 %v1066
    %1508 = vmatprep.subr.bf16.mxu0 0
    %1509 = vmatpush2.bf16.msra.mxu0 %v1065
    %1510 = vmatprep.subr.bf16.mxu0 0
    %1511 = vmatpush2.bf16.msra.mxu0 %v1064
    %1512 = vmatprep.mubr.bf16.mxu0 %v168
    %1513 = vmatmul.mubr.bf16.gmra.mxu0 %v167
    %v1514 = vpop.f32.mrf.mxu0
    %v1515 = vadd.f32 %v1475, %v1514
    %v1516 = vpop.f32.mrf.mxu0
    %v1517 = vpop.f32.mrf.mxu0
    %v1518 = vpop.f32.mrf.mxu0
    %1519 = vdwg.mxu0
    %v1520 = vmax.f32 %v1515, 0.0
    %v1521 = vld [vmem:[#allocation7] sm:$0xff]
    %v1522 = vld [vmem:[#allocation7 + $0x8] sm:$0xff]
    %v1523 = vld [vmem:[#allocation7 + $0x10] sm:$0xff]
    %v1524 = vld [vmem:[#allocation7 + $0x18] sm:$0xff]
    %v1525 = vld [vmem:[#allocation7 + $0x20] sm:$0xff]
    %v1526 = vld [vmem:[#allocation7 + $0x28] sm:$0xff]
    %v1527 = vld [vmem:[#allocation7 + $0x30] sm:$0xff]
    %v1528 = vld [vmem:[#allocation7 + $0x38] sm:$0xff]
    %v1529 = vld [vmem:[#allocation7 + $0x40] sm:$0xff]
    %v1530 = vld [vmem:[#allocation7 + $0x48] sm:$0xff]
    %v1531 = vld [vmem:[#allocation7 + $0x50] sm:$0xff]
    %v1532 = vld [vmem:[#allocation7 + $0x58] sm:$0xff]
    %v1533 = vld [vmem:[#allocation7 + $0x60] sm:$0xff]
    %v1534 = vld [vmem:[#allocation7 + $0x68] sm:$0xff]
    %v1535 = vld [vmem:[#allocation7 + $0x70] sm:$0xff]
    %v1536 = vld [vmem:[#allocation7 + $0x78] sm:$0xff]
    %v1537 = vld [vmem:[%s4] sm:$0x1]
    %v1539 = vlaneseq
    %v1540 = vshrl.u32 %v1539, 7
    %v1541 = vsub.s32 0, %v1540
    %v1542 = vrot.slane %v1537, %v1541
    %1544 = vmatprep.subr.mxu0 0.0
    %1545 = vmatpush1.msra.mxu0 %v1536
    %1546 = vmatprep.subr.mxu0 0.0
    %1547 = vmatpush1.msra.mxu0 %v1535
    %1548 = vmatprep.subr.mxu0 0.0
    %1549 = vmatpush1.msra.mxu0 %v1534
    %1550 = vmatprep.subr.mxu0 0.0
    %1551 = vmatpush1.msra.mxu0 %v1533
    %1552 = vmatprep.subr.mxu0 0.0
    %1553 = vmatpush1.msra.mxu0 %v1532
    %1554 = vmatprep.subr.mxu0 0.0
    %1555 = vmatpush1.msra.mxu0 %v1531
    %1556 = vmatprep.subr.mxu0 0.0
    %1557 = vmatpush1.msra.mxu0 %v1530
    %1558 = vmatprep.subr.mxu0 0.0
    %1559 = vmatpush1.msra.mxu0 %v1529
    %1560 = vmatprep.subr.mxu0 0.0
    %1561 = vmatpush1.msra.mxu0 %v1528
    %1562 = vmatprep.subr.mxu0 0.0
    %1563 = vmatpush1.msra.mxu0 %v1527
    %1564 = vmatprep.subr.mxu0 0.0
    %1565 = vmatpush1.msra.mxu0 %v1526
    %1566 = vmatprep.subr.mxu0 0.0
    %1567 = vmatpush1.msra.mxu0 %v1525
    %1568 = vmatprep.subr.mxu0 0.0
    %1569 = vmatpush1.msra.mxu0 %v1524
    %1570 = vmatprep.subr.mxu0 0.0
    %1571 = vmatpush1.msra.mxu0 %v1523
    %1572 = vmatprep.subr.mxu0 0.0
    %1573 = vmatpush1.msra.mxu0 %v1522
    %1574 = vmatprep.subr.mxu0 0.0
    %1575 = vmatpush1.msra.mxu0 %v1521
    %1576 = vmatprep.subr.mxu0 0.0
    %1577 = vmatpush2.msra.mxu0 0.0
    %1578 = vmatprep.subr.mxu0 0.0
    %1579 = vmatpush2.msra.mxu0 0.0
    %1580 = vmatprep.subr.mxu0 0.0
    %1581 = vmatpush2.msra.mxu0 0.0
    %1582 = vmatprep.subr.mxu0 0.0
    %1583 = vmatpush2.msra.mxu0 0.0
    %1584 = vmatprep.subr.mxu0 0.0
    %1585 = vmatpush2.msra.mxu0 0.0
    %1586 = vmatprep.subr.mxu0 0.0
    %1587 = vmatpush2.msra.mxu0 0.0
    %1588 = vmatprep.subr.mxu0 0.0
    %1589 = vmatpush2.msra.mxu0 0.0
    %1590 = vmatprep.subr.mxu0 0.0
    %1591 = vmatpush2.msra.mxu0 0.0
    %1592 = vmatprep.subr.mxu0 0.0
    %1593 = vmatpush2.msra.mxu0 0.0
    %1594 = vmatprep.subr.mxu0 0.0
    %1595 = vmatpush2.msra.mxu0 0.0
    %1596 = vmatprep.subr.mxu0 0.0
    %1597 = vmatpush2.msra.mxu0 0.0
    %1598 = vmatprep.subr.mxu0 0.0
    %1599 = vmatpush2.msra.mxu0 0.0
    %1600 = vmatprep.subr.mxu0 0.0
    %1601 = vmatpush2.msra.mxu0 0.0
    %1602 = vmatprep.subr.mxu0 0.0
    %1603 = vmatpush2.msra.mxu0 0.0
    %1604 = vmatprep.subr.mxu0 0.0
    %1605 = vmatpush2.msra.mxu0 0.0
    %1606 = vmatprep.subr.mxu0 0.0
    %1607 = vmatpush2.msra.mxu0 0.0
    %1608 = vmatprep.mubr.f32.mxu0 0.0
    %1609 = vmatmul.mubr.f32.gmra.mxu0 %v1520
    %v1610 = vpop.f32.mrf.mxu0
    %v1611 = vadd.f32 %v1542, %v1610
    %v1612 = vpop.f32.mrf.mxu0
    %1613 = vdwg.mxu0
    %vm1614 = vcmask 33792
    %1615 = vst.msk [vmem:[#allocation8] sm:$0x3] %vm1614, %v1611
    // Predicated region
    $region34: #{resnet_class1_forward.1} parent=1 // pred_check
      _
    $region35: #{resnet_class1_forward.1} parent=1 // pred_check_branch
      %1617 = sbr.rel (0) target = $region37
    $region36: #{resnet_class1_forward.1} parent=1 // pred_region
      %s1619 = ssub.s32 32, 32
      %1620 = vsyncadd [#allocation4], %s1619
      %s1622 = sshll.u32 [#allocation8], 4
      %s1623 = int_to_ptr.vmem [resolvable:$true] %s1622
      %1625 = dma.vmem_to_hbm [thread:$0]  %s1623, 32, %s5, [#allocation4]
    $region37: #{resnet_class1_forward.1} parent=1 // pred_fallthru
      _
    // Predicated region
    $region38: #{resnet_class1_forward.1} parent=1 // pred_check
      _
    $region39: #{resnet_class1_forward.1} parent=1 // pred_check_branch
      %1627 = sbr.rel (0) target = $region41
    $region40: #{resnet_class1_forward.1} parent=1 // pred_region
      %1628 = dma.done [#allocation4], 32
    $region41: #{resnet_class1_forward.1} parent=1 // pred_fallthru
      _
    %1629 = vsyncpa [#allocation3], 1
    %1630 = vsyncpa [#allocation6], 1
    %1631 = vsyncpa [#allocation4], 1

</llo_original>
